<compile_context>
chip_gen: v6e
topology: v6e:2x2x1
jax: 0.10.0
libtpu: 0.0.40
codegen_flags: <defaults>
</compile_context>

<pallas_src>
import functools

import jax
import jax.numpy as jnp
from jax.experimental import pallas as pl
from jax.experimental.pallas import tpu as pltpu

# ----------------------------- configuration -----------------------------
B = 2
C_IN = 8
OUT = 8                       # out_channels
K = 3                         # kernel_size
STRIDE = 1                    # TODO(synk): stride > 1 needs a strided im2col build
PAD = 1
DIL = 1
GROUPS = 1
RADIX = 2
REDUCTION = 4
W_IN = 16

MID = OUT * RADIX                                     # mid_chs
ATTN = max(C_IN * RADIX // REDUCTION, 32)             # attn_chs
G_CONV = GROUPS * RADIX
W_PAD_TOT = W_IN + 2 * PAD
W_OUT = (W_PAD_TOT - DIL * (K - 1) - 1) // STRIDE + 1
BN_EPS = 1e-5
VEC_COLS = max(MID, ATTN)                             # packed scale/bias lane width

assert STRIDE == 1, "kernel below only implements stride=1"
assert C_IN % G_CONV == 0 and MID % G_CONV == 0
assert OUT % GROUPS == 0 and ATTN % GROUPS == 0 and MID % GROUPS == 0


# ------------------------------- kernel ----------------------------------
def _split_attn_kernel(x_ref, wconv_ref, wfc1_ref, wfc2_ref, vec_ref,
                       out_ref, slab_ref, *, tb):
    # ---- im2col slab: (tb*W_OUT, K*C_IN); zero rows provide conv padding ----
    slab_ref[...] = jnp.zeros_like(slab_ref)
    for b in range(tb):
        xbt = x_ref[b].T                               # (W_IN, C_IN), in-kernel XLU transpose
        for k in range(K):
            lo = max(0, PAD - k * DIL)                 # valid output-row range for this tap
            hi = min(W_OUT, W_IN + PAD - k * DIL)
            if lo >= hi:
                continue
            slab_ref[b * W_OUT + lo:b * W_OUT + hi,
                     k * C_IN:(k + 1) * C_IN] = xbt[lo + k * DIL - PAD:
                                                    hi + k * DIL - PAD, :]

    # ---- grouped conv = ONE MXU matmul over all taps & the whole batch tile ----
    y = jnp.dot(slab_ref[...], wconv_ref[...],
                preferred_element_type=jnp.float32)    # (tb*W_OUT, MID)

    # ---- BN0 (inference, folded) + ReLU ----
    s0 = vec_ref[0:1, :MID]
    b0 = vec_ref[1:2, :MID]
    y = jnp.maximum(y * s0 + b0, 0.0)

    y3 = y.reshape(tb, W_OUT, MID)                     # W_OUT multiple of 8 -> aligned split

    # ---- radix sum + global average pool over W ----
    ysum = y3[:, :, 0:OUT]
    for r in range(1, RADIX):
        ysum = ysum + y3[:, :, r * OUT:(r + 1) * OUT]  # (tb, W_OUT, OUT)
    gap = jnp.sum(ysum, axis=1) * (1.0 / W_OUT)        # (tb, OUT)

    # ---- fc1 (1x1 conv) + BN1 + ReLU ----
    bfc1 = vec_ref[2:3, :ATTN]
    s1 = vec_ref[3:4, :ATTN]
    b1 = vec_ref[4:5, :ATTN]
    a = jnp.dot(gap, wfc1_ref[...], preferred_element_type=jnp.float32) + bfc1
    a = jnp.maximum(a * s1 + b1, 0.0)                  # (tb, ATTN)

    # ---- fc2 (1x1 conv) ----
    bfc2 = vec_ref[5:6, :MID]
    logits = jnp.dot(a, wfc2_ref[...],
                     preferred_element_type=jnp.float32) + bfc2   # (tb, MID)

    # ---- RadixSoftmax + weighted sum over radix ----
    if RADIX > 1:
        per = OUT // GROUPS
        rows = []
        for r in range(RADIX):
            parts = [logits[:, g * (RADIX * per) + r * per:
                               g * (RADIX * per) + (r + 1) * per]
                     for g in range(GROUPS)]
            rows.append(parts[0] if GROUPS == 1
                        else jnp.concatenate(parts, axis=1))      # (tb, OUT)
        m = rows[0]
        for r in range(1, RADIX):
            m = jnp.maximum(m, rows[r])
        exps = [jnp.exp(rw - m) for rw in rows]
        denom = exps[0]
        for r in range(1, RADIX):
            denom = denom + exps[r]
        inv = pl.reciprocal(denom, approx=True)        # EUP slot (otherwise idle)
        inv = inv * (2.0 - denom * inv)                # one Newton step -> f32 accuracy
        out3 = y3[:, :, 0:OUT] * (exps[0] * inv)[:, None, :]
        for r in range(1, RADIX):
            out3 = out3 + y3[:, :, r * OUT:(r + 1) * OUT] * (exps[r] * inv)[:, None, :]
    else:
        attn = jax.nn.sigmoid(logits)                  # (tb, MID) == (tb, OUT)
        out3 = y3 * attn[:, None, :]

    # ---- emit NCW directly: per-element XLU transpose before the store ----
    for b in range(tb):
        out_ref[b] = out3[b].T                         # (OUT, W_OUT)


# ------------------------------- wrapper ----------------------------------
def make_split_attn_conv1d(params):
    (w_conv_dense, scale0, bias0,
     w_fc1_dense, b_fc1, scale1, bias1,
     w_fc2_dense, b_fc2) = params

    # Conv weight flattened for the single im2col matmul: row index = k*C_IN + c.
    w_conv_flat = w_conv_dense.reshape(K * C_IN, MID)

    # Pack the six small scale/bias vectors into one (8, VEC_COLS) operand.
    vec = jnp.zeros((8, VEC_COLS), jnp.float32)
    vec = vec.at[0, :MID].set(scale0.reshape(-1))
    vec = vec.at[1, :MID].set(bias0.reshape(-1))
    vec = vec.at[2, :ATTN].set(b_fc1.reshape(-1))
    vec = vec.at[3, :ATTN].set(scale1.reshape(-1))
    vec = vec.at[4, :ATTN].set(bias1.reshape(-1))
    vec = vec.at[5, :MID].set(b_fc2.reshape(-1))

    def forward(x_ncw):
        bn = x_ncw.shape[0]
        # Largest batch tile <= 8 that divides bn: tb*W_OUT rows fill the MXU,
        # and grid overhead is amortized (grid=(1,) at B=2).
        # TODO(synk): on v7x prefer >=2 grid steps (tb = bn // 2) to feed both TCs.
        tb = max(d for d in range(1, min(bn, 8) + 1) if bn % d == 0)
        kernel = functools.partial(_split_attn_kernel, tb=tb)

        out = pl.pallas_call(
            kernel,
            out_shape=jax.ShapeDtypeStruct((bn, OUT, W_OUT), jnp.float32),
            grid=(bn // tb,),
            in_specs=[
                pl.BlockSpec((tb, C_IN, W_IN), lambda i: (i, 0, 0)),   # NCW input
                pl.BlockSpec((K * C_IN, MID), lambda i: (0, 0)),
                pl.BlockSpec((OUT, ATTN), lambda i: (0, 0)),
                pl.BlockSpec((ATTN, MID), lambda i: (0, 0)),
                pl.BlockSpec((8, VEC_COLS), lambda i: (0, 0)),
            ],
            out_specs=pl.BlockSpec((tb, OUT, W_OUT), lambda i: (i, 0, 0)),  # NCW output
            scratch_shapes=[pltpu.VMEM((tb * W_OUT, K * C_IN), jnp.float32)],
            compiler_params=pltpu.CompilerParams(
                dimension_semantics=("parallel",)),
        )(x_ncw.astype(jnp.float32), w_conv_flat, w_fc1_dense, w_fc2_dense, vec)
        return out                                     # already NCW (bn, OUT, W_OUT)

    return jax.jit(forward)


# -------------------- deterministic parameter construction ----------------
def build_params(key):
    ks = jax.random.split(key, 12)

    # conv: torch weight (MID, C_IN // G_CONV, K), no bias
    cin_g, cout_g = C_IN // G_CONV, MID // G_CONV
    w_conv_t = 0.2 * jax.random.normal(ks[0], (MID, cin_g, K), jnp.float32)
    w_conv_dense = jnp.zeros((K, C_IN, MID), jnp.float32)
    for g in range(G_CONV):
        blk = w_conv_t[g * cout_g:(g + 1) * cout_g]                    # (cout_g, cin_g, K)
        w_conv_dense = w_conv_dense.at[
            :, g * cin_g:(g + 1) * cin_g, g * cout_g:(g + 1) * cout_g
        ].set(jnp.transpose(blk, (2, 1, 0)))

    # bn0 (eval mode, fold running stats)
    g0 = 1.0 + 0.1 * jax.random.normal(ks[1], (MID,), jnp.float32)
    be0 = 0.1 * jax.random.normal(ks[2], (MID,), jnp.float32)
    mu0 = 0.1 * jax.random.normal(ks[3], (MID,), jnp.float32)
    var0 = jnp.abs(jax.random.normal(ks[4], (MID,), jnp.float32)) + 0.5
    scale0 = (g0 / jnp.sqrt(var0 + BN_EPS)).reshape(1, MID)
    bias0 = (be0 - mu0 * g0 / jnp.sqrt(var0 + BN_EPS)).reshape(1, MID)

    # fc1: torch weight (ATTN, OUT // GROUPS, 1) + bias (ATTN,)
    ig1, og1 = OUT // GROUPS, ATTN // GROUPS
    w_fc1_t = 0.2 * jax.random.normal(ks[5], (ATTN, ig1), jnp.float32)
    b_fc1 = 0.1 * jax.random.normal(ks[6], (ATTN,), jnp.float32)
    w_fc1_dense = jnp.zeros((OUT, ATTN), jnp.float32)
    for g in range(GROUPS):
        w_fc1_dense = w_fc1_dense.at[
            g * ig1:(g + 1) * ig1, g * og1:(g + 1) * og1
        ].set(w_fc1_t[g * og1:(g + 1) * og1].T)

    # bn1
    g1 = 1.0 + 0.1 * jax.random.normal(ks[7], (ATTN,), jnp.float32)
    be1 = 0.1 * jax.random.normal(ks[8], (ATTN,), jnp.float32)
    mu1 = 0.1 * jax.random.normal(ks[9], (ATTN,), jnp.float32)
    var1 = jnp.abs(jax.random.normal(ks[10], (ATTN,), jnp.float32)) + 0.5
    scale1 = (g1 / jnp.sqrt(var1 + BN_EPS)).reshape(1, ATTN)
    bias1 = (be1 - mu1 * g1 / jnp.sqrt(var1 + BN_EPS)).reshape(1, ATTN)

    # fc2: torch weight (MID, ATTN // GROUPS, 1) + bias (MID,)
    ig2, og2 = ATTN // GROUPS, MID // GROUPS
    w_fc2_t = 0.2 * jax.random.normal(ks[11], (MID, ig2), jnp.float32)
    b_fc2 = 0.05 * jnp.arange(MID, dtype=jnp.float32) / MID
    w_fc2_dense = jnp.zeros((ATTN, MID), jnp.float32)
    for g in range(GROUPS):
        w_fc2_dense = w_fc2_dense.at[
            g * ig2:(g + 1) * ig2, g * og2:(g + 1) * og2
        ].set(w_fc2_t[g * og2:(g + 1) * og2].T)

    torch_layout = dict(w_conv_t=w_conv_t)   # grouped-conv weight for the reference
    dense = (w_conv_dense, scale0, bias0,
             w_fc1_dense, b_fc1.reshape(1, ATTN), scale1, bias1,
             w_fc2_dense, b_fc2.reshape(1, MID))
    return dense, torch_layout


# ------------------------- pure-JAX reference (NCW) ------------------------
def reference_forward(x_ncw, dense, torch_layout):
    (w_conv_dense, scale0, bias0,
     w_fc1_dense, b_fc1, scale1, bias1,
     w_fc2_dense, b_fc2) = dense
    w_conv_t = torch_layout["w_conv_t"]

    y = jax.lax.conv_general_dilated(
        x_ncw, w_conv_t, window_strides=(STRIDE,), padding=[(PAD, PAD)],
        rhs_dilation=(DIL,), dimension_numbers=("NCH", "OIH", "NCH"),
        feature_group_count=G_CONV)                       # (B, MID, W_OUT)
    y = y * scale0.reshape(1, MID, 1) + bias0.reshape(1, MID, 1)
    y = jnp.maximum(y, 0.0)

    bn, rc, wo = y.shape
    if RADIX > 1:
        y4 = y.reshape(bn, RADIX, rc // RADIX, wo)
        x_gap = y4.sum(axis=1)
    else:
        y4 = y[:, None]
        x_gap = y
    gap = x_gap.mean(axis=-1)                             # (B, OUT)

    a = gap @ w_fc1_dense + b_fc1
    a = jnp.maximum(a * scale1 + bias1, 0.0)
    logits = a @ w_fc2_dense + b_fc2                      # (B, MID)

    if RADIX > 1:
        t = logits.reshape(bn, GROUPS, RADIX, -1).transpose(0, 2, 1, 3)
        t = jax.nn.softmax(t, axis=1)
        attn = t.reshape(bn, -1)
    else:
        attn = jax.nn.sigmoid(logits)
    attn = attn.reshape(bn, RADIX, rc // RADIX, 1)
    return (y4 * attn).sum(axis=1)                        # (B, OUT, W_OUT)


# --------------------------------- main ------------------------------------
if __name__ == "__main__":
    key = jax.random.PRNGKey(0)
    kx, kp = jax.random.split(key)
    x = jax.random.normal(kx, (B, C_IN, W_IN), jnp.float32)   # NCW, like PyTorch

    dense_params, torch_layout = build_params(kp)
    fwd = make_split_attn_conv1d(dense_params)

    out = jax.block_until_ready(fwd(x))
    ref = jax.block_until_ready(reference_forward(x, dense_params, torch_layout))

    assert out.shape == (B, OUT, W_OUT), out.shape
    err = float(jnp.max(jnp.abs(out - ref)))
    if err > 5e-4:
        raise AssertionError(f"mismatch vs reference: max abs err = {err}")
    print("KERNEL_OK")
</pallas_src>

<mosaic_0001>
module attributes {stable_mosaic.version = 11 : i64} {
  func.func @_split_attn_kernel(%arg0: i32, %arg1: memref<2x8x16xf32, #tpu.memory_space<vmem>>, %arg2: memref<24x16xf32, #tpu.memory_space<vmem>>, %arg3: memref<8x32xf32, #tpu.memory_space<vmem>>, %arg4: memref<32x16xf32, #tpu.memory_space<vmem>>, %arg5: memref<8x32xf32, #tpu.memory_space<vmem>>, %arg6: memref<2x8x16xf32, #tpu.memory_space<vmem>>, %arg7: memref<32x24xf32, #tpu.memory_space<vmem>>) attributes {dimension_semantics = [#tpu.dimension_semantics<parallel>], iteration_bounds = array<i64: 1>, scalar_prefetch = 0 : i64, scratch_operands = 1 : i64, tpu.core_type = #tpu.core_type<tc>, window_params = [{transform_indices = @transform_0, window_bounds = array<i64: 2, 8, 16>}, {pipeline_mode = #tpu.pipeline_mode<synchronous>, transform_indices = @transform_1, window_bounds = array<i64: 24, 16>}, {pipeline_mode = #tpu.pipeline_mode<synchronous>, transform_indices = @transform_2, window_bounds = array<i64: 8, 32>}, {pipeline_mode = #tpu.pipeline_mode<synchronous>, transform_indices = @transform_3, window_bounds = array<i64: 32, 16>}, {pipeline_mode = #tpu.pipeline_mode<synchronous>, transform_indices = @transform_4, window_bounds = array<i64: 8, 32>}, {transform_indices = @transform_5, window_bounds = array<i64: 2, 8, 16>}]} {
    %cst = arith.constant 0.000000e+00 : f32
    %0 = vector.broadcast %cst : f32 to vector<32x24xf32>
    %c0 = arith.constant 0 : index
    %c0_0 = arith.constant 0 : index
    %1 = vector.load %arg7[%c0, %c0_0] : memref<32x24xf32, #tpu.memory_space<vmem>>, vector<32x24xf32>
    tpu.vector_store %arg7[%c0, %c0_0], %0 {strides = array<i32>} : memref<32x24xf32, #tpu.memory_space<vmem>>, vector<32x24xf32>,
    %c0_1 = arith.constant 0 : index
    %c0_2 = arith.constant 0 : index
    %c0_3 = arith.constant 0 : index
    %2 = vector.load %arg1[%c0_1, %c0_2, %c0_3] : memref<2x8x16xf32, #tpu.memory_space<vmem>>, vector<1x8x16xf32>
    %3 = vector.shape_cast %2 : vector<1x8x16xf32> to vector<8x16xf32>
    %4 = tpu.transpose %3, [1, 0] : vector<8x16xf32> -> vector<16x8xf32>
    %5 = vector.extract_strided_slice %4 {offsets = [0, 0], sizes = [15, 8], strides = [1, 1]} : vector<16x8xf32> to vector<15x8xf32>
    %c1 = arith.constant 1 : index
    %c0_4 = arith.constant 0 : index
    %6 = vector.load %arg7[%c1, %c0_4] : memref<32x24xf32, #tpu.memory_space<vmem>>, vector<15x8xf32>
    tpu.vector_store %arg7[%c1, %c0_4], %5 {strides = array<i32>} : memref<32x24xf32, #tpu.memory_space<vmem>>, vector<15x8xf32>,
    %c0_5 = arith.constant 0 : index
    %c8 = arith.constant 8 : index
    %7 = vector.load %arg7[%c0_5, %c8] : memref<32x24xf32, #tpu.memory_space<vmem>>, vector<16x8xf32>
    tpu.vector_store %arg7[%c0_5, %c8], %4 {strides = array<i32>} : memref<32x24xf32, #tpu.memory_space<vmem>>, vector<16x8xf32>,
    %8 = vector.extract_strided_slice %4 {offsets = [1, 0], sizes = [15, 8], strides = [1, 1]} : vector<16x8xf32> to vector<15x8xf32>
    %c0_6 = arith.constant 0 : index
    %c16 = arith.constant 16 : index
    %9 = vector.load %arg7[%c0_6, %c16] : memref<32x24xf32, #tpu.memory_space<vmem>>, vector<15x8xf32>
    tpu.vector_store %arg7[%c0_6, %c16], %8 {strides = array<i32>} : memref<32x24xf32, #tpu.memory_space<vmem>>, vector<15x8xf32>,
    %c1_7 = arith.constant 1 : index
    %c0_8 = arith.constant 0 : index
    %c0_9 = arith.constant 0 : index
    %10 = vector.load %arg1[%c1_7, %c0_8, %c0_9] : memref<2x8x16xf32, #tpu.memory_space<vmem>>, vector<1x8x16xf32>
    %11 = vector.shape_cast %10 : vector<1x8x16xf32> to vector<8x16xf32>
    %12 = tpu.transpose %11, [1, 0] : vector<8x16xf32> -> vector<16x8xf32>
    %13 = vector.extract_strided_slice %12 {offsets = [0, 0], sizes = [15, 8], strides = [1, 1]} : vector<16x8xf32> to vector<15x8xf32>
    %c17 = arith.constant 17 : index
    %c0_10 = arith.constant 0 : index
    %14 = vector.load %arg7[%c17, %c0_10] : memref<32x24xf32, #tpu.memory_space<vmem>>, vector<15x8xf32>
    tpu.vector_store %arg7[%c17, %c0_10], %13 {strides = array<i32>} : memref<32x24xf32, #tpu.memory_space<vmem>>, vector<15x8xf32>,
    %c16_11 = arith.constant 16 : index
    %c8_12 = arith.constant 8 : index
    %15 = vector.load %arg7[%c16_11, %c8_12] : memref<32x24xf32, #tpu.memory_space<vmem>>, vector<16x8xf32>
    tpu.vector_store %arg7[%c16_11, %c8_12], %12 {strides = array<i32>} : memref<32x24xf32, #tpu.memory_space<vmem>>, vector<16x8xf32>,
    %16 = vector.extract_strided_slice %12 {offsets = [1, 0], sizes = [15, 8], strides = [1, 1]} : vector<16x8xf32> to vector<15x8xf32>
    %c16_13 = arith.constant 16 : index
    %c16_14 = arith.constant 16 : index
    %17 = vector.load %arg7[%c16_13, %c16_14] : memref<32x24xf32, #tpu.memory_space<vmem>>, vector<15x8xf32>
    tpu.vector_store %arg7[%c16_13, %c16_14], %16 {strides = array<i32>} : memref<32x24xf32, #tpu.memory_space<vmem>>, vector<15x8xf32>,
    %c0_15 = arith.constant 0 : index
    %c0_16 = arith.constant 0 : index
    %18 = vector.load %arg7[%c0_15, %c0_16] : memref<32x24xf32, #tpu.memory_space<vmem>>, vector<32x24xf32>
    %c0_17 = arith.constant 0 : index
    %c0_18 = arith.constant 0 : index
    %19 = vector.load %arg2[%c0_17, %c0_18] : memref<24x16xf32, #tpu.memory_space<vmem>>, vector<24x16xf32>
    %cst_19 = arith.constant dense<0.000000e+00> : vector<32x16xf32>
    %20 = tpu.matmul %18, %19, %cst_19 {dimension_numbers = #tpu.dot_dimension_numbers<[1], [0], [0], [1], [0, 0, 1, 1], [], []>} : vector<32x24xf32>, vector<24x16xf32>, vector<32x16xf32> -> vector<32x16xf32>
    %c0_20 = arith.constant 0 : index
    %c0_21 = arith.constant 0 : index
    %21 = vector.load %arg5[%c0_20, %c0_21] : memref<8x32xf32, #tpu.memory_space<vmem>>, vector<1x16xf32>
    %c1_22 = arith.constant 1 : index
    %c0_23 = arith.constant 0 : index
    %22 = vector.load %arg5[%c1_22, %c0_23] : memref<8x32xf32, #tpu.memory_space<vmem>>, vector<1x16xf32>
    %23 = vector.broadcast %21 : vector<1x16xf32> to vector<32x16xf32>
    %24 = arith.mulf %20, %23 : vector<32x16xf32>
    %25 = vector.broadcast %22 : vector<1x16xf32> to vector<32x16xf32>
    %26 = arith.addf %24, %25 : vector<32x16xf32>
    %cst_24 = arith.constant 0.000000e+00 : f32
    %27 = vector.broadcast %cst_24 : f32 to vector<32x16xf32>
    %28 = arith.maximumf %26, %27 : vector<32x16xf32>
    %29 = vector.shape_cast %28 : vector<32x16xf32> to vector<2x16x16xf32>
    %30 = vector.extract_strided_slice %29 {offsets = [0, 0, 0], sizes = [2, 16, 8], strides = [1, 1, 1]} : vector<2x16x16xf32> to vector<2x16x8xf32>
    %31 = vector.extract_strided_slice %29 {offsets = [0, 0, 8], sizes = [2, 16, 8], strides = [1, 1, 1]} : vector<2x16x16xf32> to vector<2x16x8xf32>
    %32 = arith.addf %30, %31 : vector<2x16x8xf32>
    %cst_25 = arith.constant dense<0.000000e+00> : vector<2x8xf32>
    %33 = vector.multi_reduction <add>, %32, %cst_25 [1] : vector<2x16x8xf32> to vector<2x8xf32>
    %cst_26 = arith.constant 6.250000e-02 : f32
    %34 = vector.broadcast %cst_26 : f32 to vector<2x8xf32>
    %35 = arith.mulf %33, %34 : vector<2x8xf32>
    %c2 = arith.constant 2 : index
    %c0_27 = arith.constant 0 : index
    %36 = vector.load %arg5[%c2, %c0_27] : memref<8x32xf32, #tpu.memory_space<vmem>>, vector<1x32xf32>
    %c3 = arith.constant 3 : index
    %c0_28 = arith.constant 0 : index
    %37 = vector.load %arg5[%c3, %c0_28] : memref<8x32xf32, #tpu.memory_space<vmem>>, vector<1x32xf32>
    %c4 = arith.constant 4 : index
    %c0_29 = arith.constant 0 : index
    %38 = vector.load %arg5[%c4, %c0_29] : memref<8x32xf32, #tpu.memory_space<vmem>>, vector<1x32xf32>
    %c0_30 = arith.constant 0 : index
    %c0_31 = arith.constant 0 : index
    %39 = vector.load %arg3[%c0_30, %c0_31] : memref<8x32xf32, #tpu.memory_space<vmem>>, vector<8x32xf32>
    %cst_32 = arith.constant dense<0.000000e+00> : vector<2x32xf32>
    %40 = tpu.matmul %35, %39, %cst_32 {dimension_numbers = #tpu.dot_dimension_numbers<[1], [0], [0], [1], [0, 0, 1, 1], [], []>} : vector<2x8xf32>, vector<8x32xf32>, vector<2x32xf32> -> vector<2x32xf32>
    %41 = vector.broadcast %36 : vector<1x32xf32> to vector<2x32xf32>
    %42 = arith.addf %40, %41 : vector<2x32xf32>
    %43 = vector.broadcast %37 : vector<1x32xf32> to vector<2x32xf32>
    %44 = arith.mulf %42, %43 : vector<2x32xf32>
    %45 = vector.broadcast %38 : vector<1x32xf32> to vector<2x32xf32>
    %46 = arith.addf %44, %45 : vector<2x32xf32>
    %cst_33 = arith.constant 0.000000e+00 : f32
    %47 = vector.broadcast %cst_33 : f32 to vector<2x32xf32>
    %48 = arith.maximumf %46, %47 : vector<2x32xf32>
    %c5 = arith.constant 5 : index
    %c0_34 = arith.constant 0 : index
    %49 = vector.load %arg5[%c5, %c0_34] : memref<8x32xf32, #tpu.memory_space<vmem>>, vector<1x16xf32>
    %c0_35 = arith.constant 0 : index
    %c0_36 = arith.constant 0 : index
    %50 = vector.load %arg4[%c0_35, %c0_36] : memref<32x16xf32, #tpu.memory_space<vmem>>, vector<32x16xf32>
    %cst_37 = arith.constant dense<0.000000e+00> : vector<2x16xf32>
    %51 = tpu.matmul %48, %50, %cst_37 {dimension_numbers = #tpu.dot_dimension_numbers<[1], [0], [0], [1], [0, 0, 1, 1], [], []>} : vector<2x32xf32>, vector<32x16xf32>, vector<2x16xf32> -> vector<2x16xf32>
    %52 = vector.broadcast %49 : vector<1x16xf32> to vector<2x16xf32>
    %53 = arith.addf %51, %52 : vector<2x16xf32>
    %54 = vector.extract_strided_slice %53 {offsets = [0, 0], sizes = [2, 8], strides = [1, 1]} : vector<2x16xf32> to vector<2x8xf32>
    %55 = vector.extract_strided_slice %53 {offsets = [0, 8], sizes = [2, 8], strides = [1, 1]} : vector<2x16xf32> to vector<2x8xf32>
    %56 = arith.maximumf %54, %55 : vector<2x8xf32>
    %57 = arith.subf %54, %56 : vector<2x8xf32>
    %58 = math.exp %57 : vector<2x8xf32>
    %59 = arith.subf %55, %56 : vector<2x8xf32>
    %60 = math.exp %59 : vector<2x8xf32>
    %61 = arith.addf %58, %60 : vector<2x8xf32>
    %62 = tpu.reciprocal %61 {approx = true} : vector<2x8xf32> -> vector<2x8xf32>
    %63 = arith.mulf %61, %62 : vector<2x8xf32>
    %cst_38 = arith.constant 2.000000e+00 : f32
    %64 = vector.broadcast %cst_38 : f32 to vector<2x8xf32>
    %65 = arith.subf %64, %63 : vector<2x8xf32>
    %66 = arith.mulf %62, %65 : vector<2x8xf32>
    %67 = vector.extract_strided_slice %29 {offsets = [0, 0, 0], sizes = [2, 16, 8], strides = [1, 1, 1]} : vector<2x16x16xf32> to vector<2x16x8xf32>
    %68 = arith.mulf %58, %66 : vector<2x8xf32>
    %69 = vector.shape_cast %68 : vector<2x8xf32> to vector<2x1x8xf32>
    %70 = vector.broadcast %69 : vector<2x1x8xf32> to vector<2x16x8xf32>
    %71 = arith.mulf %67, %70 : vector<2x16x8xf32>
    %72 = vector.extract_strided_slice %29 {offsets = [0, 0, 8], sizes = [2, 16, 8], strides = [1, 1, 1]} : vector<2x16x16xf32> to vector<2x16x8xf32>
    %73 = arith.mulf %60, %66 : vector<2x8xf32>
    %74 = vector.shape_cast %73 : vector<2x8xf32> to vector<2x1x8xf32>
    %75 = vector.broadcast %74 : vector<2x1x8xf32> to vector<2x16x8xf32>
    %76 = arith.mulf %72, %75 : vector<2x16x8xf32>
    %77 = arith.addf %71, %76 : vector<2x16x8xf32>
    %78 = vector.extract_strided_slice %77 {offsets = [0, 0, 0], sizes = [1, 16, 8], strides = [1, 1, 1]} : vector<2x16x8xf32> to vector<1x16x8xf32>
    %79 = vector.shape_cast %78 : vector<1x16x8xf32> to vector<16x8xf32>
    %80 = tpu.transpose %79, [1, 0] : vector<16x8xf32> -> vector<8x16xf32>
    %c0_39 = arith.constant 0 : index
    %c0_40 = arith.constant 0 : index
    %c0_41 = arith.constant 0 : index
    %81 = vector.load %arg6[%c0_39, %c0_40, %c0_41] : memref<2x8x16xf32, #tpu.memory_space<vmem>>, vector<1x8x16xf32>
    %82 = vector.shape_cast %81 : vector<1x8x16xf32> to vector<8x16xf32>
    %83 = vector.shape_cast %80 : vector<8x16xf32> to vector<1x8x16xf32>
    tpu.vector_store %arg6[%c0_39, %c0_40, %c0_41], %83 {strides = array<i32>} : memref<2x8x16xf32, #tpu.memory_space<vmem>>, vector<1x8x16xf32>,
    %84 = vector.extract_strided_slice %77 {offsets = [1, 0, 0], sizes = [1, 16, 8], strides = [1, 1, 1]} : vector<2x16x8xf32> to vector<1x16x8xf32>
    %85 = vector.shape_cast %84 : vector<1x16x8xf32> to vector<16x8xf32>
    %86 = tpu.transpose %85, [1, 0] : vector<16x8xf32> -> vector<8x16xf32>
    %c1_42 = arith.constant 1 : index
    %c0_43 = arith.constant 0 : index
    %c0_44 = arith.constant 0 : index
    %87 = vector.load %arg6[%c1_42, %c0_43, %c0_44] : memref<2x8x16xf32, #tpu.memory_space<vmem>>, vector<1x8x16xf32>
    %88 = vector.shape_cast %87 : vector<1x8x16xf32> to vector<8x16xf32>
    %89 = vector.shape_cast %86 : vector<8x16xf32> to vector<1x8x16xf32>
    tpu.vector_store %arg6[%c1_42, %c0_43, %c0_44], %89 {strides = array<i32>} : memref<2x8x16xf32, #tpu.memory_space<vmem>>, vector<1x8x16xf32>,
    return
  }
  func.func @transform_0(%arg0: i32) -> (i32, i32, i32) {
    %c0_i32 = arith.constant 0 : i32
    %c0_i32_0 = arith.constant 0 : i32
    %c0_i32_1 = arith.constant 0 : i32
    return %arg0, %c0_i32, %c0_i32_0 : i32, i32, i32
  }
  func.func @transform_1(%arg0: i32) -> (i32, i32) {
    %c0_i32 = arith.constant 0 : i32
    %c0_i32_0 = arith.constant 0 : i32
    %c0_i32_1 = arith.constant 0 : i32
    return %c0_i32, %c0_i32_0 : i32, i32
  }
  func.func @transform_2(%arg0: i32) -> (i32, i32) {
    %c0_i32 = arith.constant 0 : i32
    %c0_i32_0 = arith.constant 0 : i32
    %c0_i32_1 = arith.constant 0 : i32
    return %c0_i32, %c0_i32_0 : i32, i32
  }
  func.func @transform_3(%arg0: i32) -> (i32, i32) {
    %c0_i32 = arith.constant 0 : i32
    %c0_i32_0 = arith.constant 0 : i32
    %c0_i32_1 = arith.constant 0 : i32
    return %c0_i32, %c0_i32_0 : i32, i32
  }
  func.func @transform_4(%arg0: i32) -> (i32, i32) {
    %c0_i32 = arith.constant 0 : i32
    %c0_i32_0 = arith.constant 0 : i32
    %c0_i32_1 = arith.constant 0 : i32
    return %c0_i32, %c0_i32_0 : i32, i32
  }
  func.func @transform_5(%arg0: i32) -> (i32, i32, i32) {
    %c0_i32 = arith.constant 0 : i32
    %c0_i32_0 = arith.constant 0 : i32
    %c0_i32_1 = arith.constant 0 : i32
    return %arg0, %c0_i32, %c0_i32_0 : i32, i32, i32
  }
}

</mosaic_0001>

<llo_original>
// kernel: forward.1
$region0: #{forward.1}
  #allocation0 [shape = 'u32[]', space=smem, size = 0x4, offset = 0x4, fixed_abs, tag = 'smem constant byte address 0x4 - core index']
  #allocation1 [shape = 'u32[144,128]{1,0:T(1,128)}', space=vmem, size = 0x12000, scoped, tag = 'internal scratch']
  #allocation2 [shape = 'f32[32,24]{1,0:T(8,128)}', space=vmem, size = 0x4000, scoped, tag = 'scratch operand']
  %s0 = inlined_call_operand.hbm [shape: f32[2,8,16], index: 0, kind: input, shape index: {}]
  %s1 = inlined_call_operand.hbm [shape: f32[24,16], index: 1, kind: input, shape index: {}]
  %s2 = inlined_call_operand.hbm [shape: f32[8,32], index: 2, kind: input, shape index: {}]
  %s3 = inlined_call_operand.hbm [shape: f32[32,16], index: 3, kind: input, shape index: {}]
  %s4 = inlined_call_operand.hbm [shape: f32[8,32], index: 4, kind: input, shape index: {}]
  %s5 = inlined_call_operand.hbm [shape: f32[2,8,16], index: 5, kind: output, shape index: {}]
  %s6 = sld [smem:[#allocation0]]
  $region50: #{forward.1} parent=0
    _
  %s8 = ssub.s32 1, %s6
  %s9 = scalar_select 0, %s8, %s6
  $region1: #{forward.1} parent=0
    #allocation3 [shape = 'u8[8192]{0}', space=vmem, size = 0x2000, scoped, tag = 'input window, operand 0, single buffered']
    #allocation4 [shape = 's32[1]{0}', space=sflag, size = 0x4, scoped, tag = 'scoped memory for forward.1']
    #allocation5 [shape = 's32[1]{0}', space=sflag, size = 0x4, scoped, tag = 'scoped memory for forward.1']
    #allocation6 [shape = 'u8[12288]{0}', space=vmem, size = 0x3000, scoped, tag = 'input window, operand 1, single buffered']
    #allocation7 [shape = 's32[1]{0}', space=sflag, size = 0x4, scoped, tag = 'scoped memory for forward.1']
    #allocation8 [shape = 'u8[4096]{0}', space=vmem, size = 0x1000, scoped, tag = 'input window, operand 2, single buffered']
    #allocation9 [shape = 'u8[16384]{0}', space=vmem, size = 0x4000, scoped, tag = 'input window, operand 3, single buffered']
    #allocation10 [shape = 's32[1]{0}', space=sflag, size = 0x4, scoped, tag = 'scoped memory for forward.1']
    #allocation11 [shape = 'u8[4096]{0}', space=vmem, size = 0x1000, scoped, tag = 'input window, operand 4, single buffered']
    #allocation12 [shape = 'u8[8192]{0}', space=vmem, size = 0x2000, scoped, tag = 'output window, operand 0, single buffered']
    %10 = vsyncpa [#allocation4], 0
    %11 = vsyncpa [#allocation7], 0
    %12 = vsyncpa [#allocation10], 0
    %13 = vsyncpa [#allocation5], 0
    // Predicated region
    $region2: #{forward.1} parent=1 // pred_check
      _
    $region3: #{forward.1} parent=1 // pred_check_branch
      %15 = sbr.rel (0) target = $region5
    $region4: #{forward.1} parent=1 // pred_region
      %s17 = ssub.s32 256, 256
      %18 = vsyncadd [#allocation4], %s17
      %s19 = sshll.u32 [#allocation3], 4
      %s20 = int_to_ptr.vmem [resolvable:$true] %s19
      %25 = dma.hbm_to_vmem [thread:$0]  %s0, 256, %s20, [#allocation4], 128, 128, 8
    $region5: #{forward.1} parent=1 // pred_fallthru
      _
    // Predicated region
    $region6: #{forward.1} parent=1 // pred_check
      _
    $region7: #{forward.1} parent=1 // pred_check_branch
      %27 = sbr.rel (0) target = $region9
    $region8: #{forward.1} parent=1 // pred_region
      %s29 = ssub.s32 384, 384
      %30 = vsyncadd [#allocation7], %s29
      %s31 = sshll.u32 [#allocation6], 4
      %s32 = int_to_ptr.vmem [resolvable:$true] %s31
      %37 = dma.hbm_to_vmem [thread:$0]  %s1, 384, %s32, [#allocation7], 128, 128, 8
    $region9: #{forward.1} parent=1 // pred_fallthru
      _
    // Predicated region
    $region10: #{forward.1} parent=1 // pred_check
      _
    $region11: #{forward.1} parent=1 // pred_check_branch
      %39 = sbr.rel (0) target = $region13
    $region12: #{forward.1} parent=1 // pred_region
      %s41 = ssub.s32 128, 128
      %42 = vsyncadd [#allocation7], %s41
      %s44 = sshll.u32 [#allocation8], 4
      %s45 = int_to_ptr.vmem [resolvable:$true] %s44
      %47 = dma.hbm_to_vmem [thread:$0]  %s2, 128, %s45, [#allocation7]
    $region13: #{forward.1} parent=1 // pred_fallthru
      _
    // Predicated region
    $region14: #{forward.1} parent=1 // pred_check
      _
    $region15: #{forward.1} parent=1 // pred_check_branch
      %49 = sbr.rel (0) target = $region17
    $region16: #{forward.1} parent=1 // pred_region
      %s51 = ssub.s32 512, 512
      %52 = vsyncadd [#allocation10], %s51
      %s53 = sshll.u32 [#allocation9], 4
      %s54 = int_to_ptr.vmem [resolvable:$true] %s53
      %59 = dma.hbm_to_vmem [thread:$0]  %s3, 512, %s54, [#allocation10], 128, 128, 8
    $region17: #{forward.1} parent=1 // pred_fallthru
      _
    // Predicated region
    $region18: #{forward.1} parent=1 // pred_check
      _
    $region19: #{forward.1} parent=1 // pred_check_branch
      %61 = sbr.rel (0) target = $region21
    $region20: #{forward.1} parent=1 // pred_region
      %s63 = ssub.s32 128, 128
      %64 = vsyncadd [#allocation10], %s63
      %s66 = sshll.u32 [#allocation11], 4
      %s67 = int_to_ptr.vmem [resolvable:$true] %s66
      %69 = dma.hbm_to_vmem [thread:$0]  %s4, 128, %s67, [#allocation10]
    $region21: #{forward.1} parent=1 // pred_fallthru
      _
    // Predicated region
    $region22: #{forward.1} parent=1 // pred_check
      _
    $region23: #{forward.1} parent=1 // pred_check_branch
      %71 = sbr.rel (0) target = $region25
    $region24: #{forward.1} parent=1 // pred_region
      %72 = dma.done [#allocation4], 256
    $region25: #{forward.1} parent=1 // pred_fallthru
      _
    // Predicated region
    $region26: #{forward.1} parent=1 // pred_check
      _
    $region27: #{forward.1} parent=1 // pred_check_branch
      %74 = sbr.rel (0) target = $region29
    $region28: #{forward.1} parent=1 // pred_region
      %75 = dma.done [#allocation7], 384
    $region29: #{forward.1} parent=1 // pred_fallthru
      _
    // Predicated region
    $region30: #{forward.1} parent=1 // pred_check
      _
    $region31: #{forward.1} parent=1 // pred_check_branch
      %77 = sbr.rel (0) target = $region33
    $region32: #{forward.1} parent=1 // pred_region
      %78 = dma.done [#allocation7], 128
    $region33: #{forward.1} parent=1 // pred_fallthru
      _
    // Predicated region
    $region34: #{forward.1} parent=1 // pred_check
      _
    $region35: #{forward.1} parent=1 // pred_check_branch
      %80 = sbr.rel (0) target = $region37
    $region36: #{forward.1} parent=1 // pred_region
      %81 = dma.done [#allocation10], 512
    $region37: #{forward.1} parent=1 // pred_fallthru
      _
    // Predicated region
    $region38: #{forward.1} parent=1 // pred_check
      _
    $region39: #{forward.1} parent=1 // pred_check_branch
      %83 = sbr.rel (0) target = $region41
    $region40: #{forward.1} parent=1 // pred_region
      %84 = dma.done [#allocation10], 128
    $region41: #{forward.1} parent=1 // pred_fallthru
      _
    %vm85 = vcmask 195584
    %86 = vst.msk [vmem:[#allocation2] sm:$0xff] %vm85, 0.0
    %87 = vst.msk [vmem:[#allocation2 + $0x8] sm:$0xff] %vm85, 0.0
    %88 = vst.msk [vmem:[#allocation2 + $0x10] sm:$0xff] %vm85, 0.0
    %89 = vst.msk [vmem:[#allocation2 + $0x18] sm:$0xff] %vm85, 0.0
    %v90 = vld [vmem:[#allocation3] sm:$0xff]
    %91 = vxpose.xlu0.b32.start [1/16] %v90, 128
    %92 = vxpose.xlu0.b32.cont [2/16] 0.0, 128
    %93 = vxpose.xlu0.b32.cont [3/16] 0.0, 128
    %94 = vxpose.xlu0.b32.cont [4/16] 0.0, 128
    %95 = vxpose.xlu0.b32.cont [5/16] 0.0, 128
    %96 = vxpose.xlu0.b32.cont [6/16] 0.0, 128
    %97 = vxpose.xlu0.b32.cont [7/16] 0.0, 128
    %98 = vxpose.xlu0.b32.cont [8/16] 0.0, 128
    %99 = vxpose.xlu0.b32.cont [9/16] 0.0, 128
    %100 = vxpose.xlu0.b32.cont [10/16] 0.0, 128
    %101 = vxpose.xlu0.b32.cont [11/16] 0.0, 128
    %102 = vxpose.xlu0.b32.cont [12/16] 0.0, 128
    %103 = vxpose.xlu0.b32.cont [13/16] 0.0, 128
    %104 = vxpose.xlu0.b32.cont [14/16] 0.0, 128
    %105 = vxpose.xlu0.b32.cont [15/16] 0.0, 128
    %106 = vxpose.xlu0.b32.end [16/16] 0.0, 128
    %v107 = vpop.trf.xlu0
    %v108 = vpop.trf.xlu0
    %v109 = vpop.trf.xlu0
    %v110 = vpop.trf.xlu0
    %v111 = vpop.trf.xlu0
    %v112 = vpop.trf.xlu0
    %v113 = vpop.trf.xlu0
    %v114 = vpop.trf.xlu0
    %v115 = vpop.trf.xlu0
    %v116 = vpop.trf.xlu0
    %v117 = vpop.trf.xlu0
    %v118 = vpop.trf.xlu0
    %v119 = vpop.trf.xlu0
    %v120 = vpop.trf.xlu0
    %v121 = vpop.trf.xlu0
    %v122 = vpop.trf.xlu0
    %vm123 = vcmask 64512
    %124 = vst.msk [vmem:[#allocation2 + $0x1] sm:$0xff] %vm123, %v107
    %vm125 = vcmask 63488
    %126 = vst.msk [vmem:[#allocation2 + $0x9] sm:$0x7f] %vm125, %v108
    %129 = vrot.lane.b32.xlu0 %v107, 8
    %v130 = vpop.permute.xlu0 %129
    %131 = vrot.lane.b32.xlu0 %v108, 8
    %v132 = vpop.permute.xlu0 %131
    %vm135 = vcmask 130112
    %136 = vst.msk [vmem:[#allocation2] sm:$0xff] %vm135, %v130
    %137 = vst.msk [vmem:[#allocation2 + $0x8] sm:$0xff] %vm135, %v132
    %138 = vrot.lane.b32.xlu0 %v107, 16
    %v139 = vpop.permute.xlu0 %138
    %140 = vrot.lane.b32.xlu0 %v108, 16
    %v141 = vpop.permute.xlu0 %140
    %vm144 = vcmask 195713
    %145 = vst.msk [vmem:[#allocation2 - $0x1] sm:$0xfe] %vm144, %v139
    %vm146 = vcmask 195712
    %147 = vst.msk [vmem:[#allocation2 + $0x7] sm:$0xff] %vm146, %v141
    %s148 = scalar_lea.vmem [#allocation3], 8
    %v149 = vld [vmem:[%s148] sm:$0xff]
    %150 = vxpose.xlu0.b32.start [1/16] %v149, 128
    %151 = vxpose.xlu0.b32.cont [2/16] 0.0, 128
    %152 = vxpose.xlu0.b32.cont [3/16] 0.0, 128
    %153 = vxpose.xlu0.b32.cont [4/16] 0.0, 128
    %154 = vxpose.xlu0.b32.cont [5/16] 0.0, 128
    %155 = vxpose.xlu0.b32.cont [6/16] 0.0, 128
    %156 = vxpose.xlu0.b32.cont [7/16] 0.0, 128
    %157 = vxpose.xlu0.b32.cont [8/16] 0.0, 128
    %158 = vxpose.xlu0.b32.cont [9/16] 0.0, 128
    %159 = vxpose.xlu0.b32.cont [10/16] 0.0, 128
    %160 = vxpose.xlu0.b32.cont [11/16] 0.0, 128
    %161 = vxpose.xlu0.b32.cont [12/16] 0.0, 128
    %162 = vxpose.xlu0.b32.cont [13/16] 0.0, 128
    %163 = vxpose.xlu0.b32.cont [14/16] 0.0, 128
    %164 = vxpose.xlu0.b32.cont [15/16] 0.0, 128
    %165 = vxpose.xlu0.b32.end [16/16] 0.0, 128
    %v166 = vpop.trf.xlu0
    %v167 = vpop.trf.xlu0
    %v168 = vpop.trf.xlu0
    %v169 = vpop.trf.xlu0
    %v170 = vpop.trf.xlu0
    %v171 = vpop.trf.xlu0
    %v172 = vpop.trf.xlu0
    %v173 = vpop.trf.xlu0
    %v174 = vpop.trf.xlu0
    %v175 = vpop.trf.xlu0
    %v176 = vpop.trf.xlu0
    %v177 = vpop.trf.xlu0
    %v178 = vpop.trf.xlu0
    %v179 = vpop.trf.xlu0
    %v180 = vpop.trf.xlu0
    %v181 = vpop.trf.xlu0
    %182 = vst.msk [vmem:[#allocation2 + $0x11] sm:$0xff] %vm123, %v166
    %183 = vst.msk [vmem:[#allocation2 + $0x19] sm:$0x7f] %vm125, %v167
    %186 = vrot.lane.b32.xlu0 %v166, 8
    %v187 = vpop.permute.xlu0 %186
    %188 = vrot.lane.b32.xlu0 %v167, 8
    %v189 = vpop.permute.xlu0 %188
    %192 = vst.msk [vmem:[#allocation2 + $0x10] sm:$0xff] %vm135, %v187
    %193 = vst.msk [vmem:[#allocation2 + $0x18] sm:$0xff] %vm135, %v189
    %194 = vrot.lane.b32.xlu0 %v166, 16
    %v195 = vpop.permute.xlu0 %194
    %196 = vrot.lane.b32.xlu0 %v167, 16
    %v197 = vpop.permute.xlu0 %196
    %200 = vst.msk [vmem:[#allocation2 + $0xf] sm:$0xfe] %vm144, %v195
    %201 = vst.msk [vmem:[#allocation2 + $0x17] sm:$0xff] %vm146, %v197
    %v202 = vld [vmem:[#allocation2] sm:$0xff]
    %v203 = vld [vmem:[#allocation2 + $0x8] sm:$0xff]
    %v204 = vld [vmem:[#allocation2 + $0x10] sm:$0xff]
    %v205 = vld [vmem:[#allocation2 + $0x18] sm:$0xff]
    %v206 = vld [vmem:[#allocation6] sm:$0xff]
    %v207 = vld [vmem:[#allocation6 + $0x8] sm:$0xff]
    %v208 = vld [vmem:[#allocation6 + $0x10] sm:$0xff]
    %v210 = vsel %vm85, %v202, 0
    %v213 = vsel %vm85, %v203, 0
    %v216 = vsel %vm85, %v204, 0
    %v219 = vsel %vm85, %v205, 0
    %221 = vmatprep.subr.mxu0 0.0
    %222 = vmatpush1.msra.mxu0 0.0
    %223 = vmatprep.subr.mxu0 0.0
    %224 = vmatpush1.msra.mxu0 0.0
    %225 = vmatprep.subr.mxu0 0.0
    %226 = vmatpush1.msra.mxu0 0.0
    %227 = vmatprep.subr.mxu0 0.0
    %228 = vmatpush1.msra.mxu0 0.0
    %229 = vmatprep.subr.mxu0 0.0
    %230 = vmatpush1.msra.mxu0 0.0
    %231 = vmatprep.subr.mxu0 0.0
    %232 = vmatpush1.msra.mxu0 0.0
    %233 = vmatprep.subr.mxu0 0.0
    %234 = vmatpush1.msra.mxu0 0.0
    %235 = vmatprep.subr.mxu0 0.0
    %236 = vmatpush1.msra.mxu0 0.0
    %237 = vmatprep.subr.mxu0 0.0
    %238 = vmatpush1.msra.mxu0 0.0
    %239 = vmatprep.subr.mxu0 0.0
    %240 = vmatpush1.msra.mxu0 0.0
    %241 = vmatprep.subr.mxu0 0.0
    %242 = vmatpush1.msra.mxu0 0.0
    %243 = vmatprep.subr.mxu0 0.0
    %244 = vmatpush1.msra.mxu0 0.0
    %245 = vmatprep.subr.mxu0 0.0
    %246 = vmatpush1.msra.mxu0 0.0
    %247 = vmatprep.subr.mxu0 0.0
    %248 = vmatpush1.msra.mxu0 %v208
    %249 = vmatprep.subr.mxu0 0.0
    %250 = vmatpush1.msra.mxu0 %v207
    %251 = vmatprep.subr.mxu0 0.0
    %252 = vmatpush1.msra.mxu0 %v206
    %253 = vmatprep.subr.mxu0 0.0
    %254 = vmatpush2.msra.mxu0 0.0
    %255 = vmatprep.subr.mxu0 0.0
    %256 = vmatpush2.msra.mxu0 0.0
    %257 = vmatprep.subr.mxu0 0.0
    %258 = vmatpush2.msra.mxu0 0.0
    %259 = vmatprep.subr.mxu0 0.0
    %260 = vmatpush2.msra.mxu0 0.0
    %261 = vmatprep.subr.mxu0 0.0
    %262 = vmatpush2.msra.mxu0 0.0
    %263 = vmatprep.subr.mxu0 0.0
    %264 = vmatpush2.msra.mxu0 0.0
    %265 = vmatprep.subr.mxu0 0.0
    %266 = vmatpush2.msra.mxu0 0.0
    %267 = vmatprep.subr.mxu0 0.0
    %268 = vmatpush2.msra.mxu0 0.0
    %269 = vmatprep.subr.mxu0 0.0
    %270 = vmatpush2.msra.mxu0 0.0
    %271 = vmatprep.subr.mxu0 0.0
    %272 = vmatpush2.msra.mxu0 0.0
    %273 = vmatprep.subr.mxu0 0.0
    %274 = vmatpush2.msra.mxu0 0.0
    %275 = vmatprep.subr.mxu0 0.0
    %276 = vmatpush2.msra.mxu0 0.0
    %277 = vmatprep.subr.mxu0 0.0
    %278 = vmatpush2.msra.mxu0 0.0
    %279 = vmatprep.subr.mxu0 0.0
    %280 = vmatpush2.msra.mxu0 0.0
    %281 = vmatprep.subr.mxu0 0.0
    %282 = vmatpush2.msra.mxu0 0.0
    %283 = vmatprep.subr.mxu0 0.0
    %284 = vmatpush2.msra.mxu0 0.0
    %285 = vmatprep.mubr.f32.mxu0 0.0
    %286 = vmatmul.mubr.f32.gmra.mxu0 %v210
    %v287 = vpop.f32.mrf.mxu0
    %v288 = vadd.f32 0.0, %v287
    %v289 = vpop.f32.mrf.mxu0
    %290 = vmatprep.mubr.f32.mxu0 0.0
    %291 = vmatmul.mubr.f32.gmra.mxu0 %v213
    %v292 = vpop.f32.mrf.mxu0
    %v293 = vadd.f32 0.0, %v292
    %v294 = vpop.f32.mrf.mxu0
    %295 = vmatprep.mubr.f32.mxu0 0.0
    %296 = vmatmul.mubr.f32.gmra.mxu0 %v216
    %v297 = vpop.f32.mrf.mxu0
    %v298 = vadd.f32 0.0, %v297
    %v299 = vpop.f32.mrf.mxu0
    %300 = vmatprep.mubr.f32.mxu0 0.0
    %301 = vmatmul.mubr.f32.gmra.mxu0 %v219
    %v302 = vpop.f32.mrf.mxu0
    %v303 = vadd.f32 0.0, %v302
    %v304 = vpop.f32.mrf.mxu0
    %305 = vdwg.mxu0
    %v306 = vld [vmem:[#allocation11] sm:$0x1]
    %v307 = vld [vmem:[#allocation11 + $0x1] sm:$0x1]
    %v308 = vlaneseq
    %v309 = vshrl.u32 %v308, 7
    %v310 = vsub.s32 0, %v309
    %v311 = vrot.slane %v306, %v310
    %v312 = vmul.f32 %v288, %v311
    %v313 = vmul.f32 %v293, %v311
    %v314 = vmul.f32 %v298, %v311
    %v315 = vmul.f32 %v303, %v311
    %v316 = vlaneseq
    %v317 = vshrl.u32 %v316, 7
    %v318 = vsub.s32 0, %v317
    %v319 = vrot.slane %v307, %v318
    %v320 = vadd.f32 %v312, %v319
    %v321 = vadd.f32 %v313, %v319
    %v322 = vadd.f32 %v314, %v319
    %v323 = vadd.f32 %v315, %v319
    %v324 = vmax.f32 %v320, 0.0
    %v325 = vmax.f32 %v321, 0.0
    %v326 = vmax.f32 %v322, 0.0
    %v327 = vmax.f32 %v323, 0.0
    %332 = vrot.lane.b32.xlu0 %v324, 120
    %v333 = vpop.permute.xlu0 %332
    %334 = vrot.lane.b32.xlu0 %v325, 120
    %v335 = vpop.permute.xlu0 %334
    %336 = vrot.lane.b32.xlu0 %v326, 120
    %v337 = vpop.permute.xlu0 %336
    %338 = vrot.lane.b32.xlu0 %v327, 120
    %v339 = vpop.permute.xlu0 %338
    %v344 = vadd.f32 %v324, %v333
    %v345 = vadd.f32 %v325, %v335
    %v346 = vadd.f32 %v326, %v337
    %v347 = vadd.f32 %v327, %v339
    %v348 = vsel %vm123, %v344, 0.0
    %v349 = vsel %vm123, %v345, 0.0
    %v350 = vadd.f32 %v348, %v349
    %v351 = vrot.slane %v350, 4
    %v352 = vadd.f32 %v350, %v351
    %v353 = vrot.slane %v352, 2
    %v354 = vadd.f32 %v352, %v353
    %v355 = vrot.slane %v354, 1
    %v356 = vadd.f32 %v354, %v355
    %v357 = vsel %vm123, %v346, 0.0
    %v358 = vsel %vm123, %v347, 0.0
    %v359 = vadd.f32 %v357, %v358
    %v360 = vrot.slane %v359, 4
    %v361 = vadd.f32 %v359, %v360
    %v362 = vrot.slane %v361, 2
    %v363 = vadd.f32 %v361, %v362
    %v364 = vrot.slane %v363, 1
    %v365 = vadd.f32 %v363, %v364
    %v366 = vmul.f32 %v356, 0.0625
    %v367 = vmul.f32 %v365, 0.0625
    %v368 = vld [vmem:[#allocation11 + $0x2] sm:$0x1]
    %v369 = vld [vmem:[#allocation11 + $0x3] sm:$0x1]
    %v370 = vld [vmem:[#allocation11 + $0x4] sm:$0x1]
    %v371 = vld [vmem:[#allocation8] sm:$0xff]
    %v372 = vlaneseq
    %v373 = vshrl.u32 %v372, 7
    %v374 = vsub.s32 0, %v373
    %v375 = vrot.slane %v368, %v374
    %vm378 = vcmask 1041409
    %v379 = vsel %vm378, %v367, %v366
    %v380 = vsel %vm123, %v379, 0
    %382 = vmatprep.subr.mxu0 0.0
    %383 = vmatpush1.msra.mxu0 0.0
    %384 = vmatprep.subr.mxu0 0.0
    %385 = vmatpush1.msra.mxu0 0.0
    %386 = vmatprep.subr.mxu0 0.0
    %387 = vmatpush1.msra.mxu0 0.0
    %388 = vmatprep.subr.mxu0 0.0
    %389 = vmatpush1.msra.mxu0 0.0
    %390 = vmatprep.subr.mxu0 0.0
    %391 = vmatpush1.msra.mxu0 0.0
    %392 = vmatprep.subr.mxu0 0.0
    %393 = vmatpush1.msra.mxu0 0.0
    %394 = vmatprep.subr.mxu0 0.0
    %395 = vmatpush1.msra.mxu0 0.0
    %396 = vmatprep.subr.mxu0 0.0
    %397 = vmatpush1.msra.mxu0 0.0
    %398 = vmatprep.subr.mxu0 0.0
    %399 = vmatpush1.msra.mxu0 0.0
    %400 = vmatprep.subr.mxu0 0.0
    %401 = vmatpush1.msra.mxu0 0.0
    %402 = vmatprep.subr.mxu0 0.0
    %403 = vmatpush1.msra.mxu0 0.0
    %404 = vmatprep.subr.mxu0 0.0
    %405 = vmatpush1.msra.mxu0 0.0
    %406 = vmatprep.subr.mxu0 0.0
    %407 = vmatpush1.msra.mxu0 0.0
    %408 = vmatprep.subr.mxu0 0.0
    %409 = vmatpush1.msra.mxu0 0.0
    %410 = vmatprep.subr.mxu0 0.0
    %411 = vmatpush1.msra.mxu0 0.0
    %412 = vmatprep.subr.mxu0 0.0
    %413 = vmatpush1.msra.mxu0 %v371
    %414 = vmatprep.subr.mxu0 0.0
    %415 = vmatpush2.msra.mxu0 0.0
    %416 = vmatprep.subr.mxu0 0.0
    %417 = vmatpush2.msra.mxu0 0.0
    %418 = vmatprep.subr.mxu0 0.0
    %419 = vmatpush2.msra.mxu0 0.0
    %420 = vmatprep.subr.mxu0 0.0
    %421 = vmatpush2.msra.mxu0 0.0
    %422 = vmatprep.subr.mxu0 0.0
    %423 = vmatpush2.msra.mxu0 0.0
    %424 = vmatprep.subr.mxu0 0.0
    %425 = vmatpush2.msra.mxu0 0.0
    %426 = vmatprep.subr.mxu0 0.0
    %427 = vmatpush2.msra.mxu0 0.0
    %428 = vmatprep.subr.mxu0 0.0
    %429 = vmatpush2.msra.mxu0 0.0
    %430 = vmatprep.subr.mxu0 0.0
    %431 = vmatpush2.msra.mxu0 0.0
    %432 = vmatprep.subr.mxu0 0.0
    %433 = vmatpush2.msra.mxu0 0.0
    %434 = vmatprep.subr.mxu0 0.0
    %435 = vmatpush2.msra.mxu0 0.0
    %436 = vmatprep.subr.mxu0 0.0
    %437 = vmatpush2.msra.mxu0 0.0
    %438 = vmatprep.subr.mxu0 0.0
    %439 = vmatpush2.msra.mxu0 0.0
    %440 = vmatprep.subr.mxu0 0.0
    %441 = vmatpush2.msra.mxu0 0.0
    %442 = vmatprep.subr.mxu0 0.0
    %443 = vmatpush2.msra.mxu0 0.0
    %444 = vmatprep.subr.mxu0 0.0
    %445 = vmatpush2.msra.mxu0 0.0
    %446 = vmatprep.mubr.f32.mxu0 0.0
    %447 = vmatmul.mubr.f32.gmra.mxu0 %v380
    %v448 = vpop.f32.mrf.mxu0
    %v449 = vadd.f32 %v375, %v448
    %v450 = vpop.f32.mrf.mxu0
    %451 = vdwg.mxu0
    %v452 = vlaneseq
    %v453 = vshrl.u32 %v452, 7
    %v454 = vsub.s32 0, %v453
    %v455 = vrot.slane %v369, %v454
    %v456 = vmul.f32 %v449, %v455
    %v457 = vlaneseq
    %v458 = vshrl.u32 %v457, 7
    %v459 = vsub.s32 0, %v458
    %v460 = vrot.slane %v370, %v459
    %v461 = vadd.f32 %v456, %v460
    %v462 = vmax.f32 %v461, 0.0
    %v463 = vld [vmem:[#allocation11 + $0x5] sm:$0x1]
    %v464 = vld [vmem:[#allocation9] sm:$0xff]
    %v465 = vld [vmem:[#allocation9 + $0x8] sm:$0xff]
    %v466 = vld [vmem:[#allocation9 + $0x10] sm:$0xff]
    %v467 = vld [vmem:[#allocation9 + $0x18] sm:$0xff]
    %v468 = vlaneseq
    %v469 = vshrl.u32 %v468, 7
    %v470 = vsub.s32 0, %v469
    %v471 = vrot.slane %v463, %v470
    %vm472 = vcmask 261120
    %v474 = vsel %vm472, %v462, 0
    %476 = vmatprep.subr.mxu0 0.0
    %477 = vmatpush1.msra.mxu0 0.0
    %478 = vmatprep.subr.mxu0 0.0
    %479 = vmatpush1.msra.mxu0 0.0
    %480 = vmatprep.subr.mxu0 0.0
    %481 = vmatpush1.msra.mxu0 0.0
    %482 = vmatprep.subr.mxu0 0.0
    %483 = vmatpush1.msra.mxu0 0.0
    %484 = vmatprep.subr.mxu0 0.0
    %485 = vmatpush1.msra.mxu0 0.0
    %486 = vmatprep.subr.mxu0 0.0
    %487 = vmatpush1.msra.mxu0 0.0
    %488 = vmatprep.subr.mxu0 0.0
    %489 = vmatpush1.msra.mxu0 0.0
    %490 = vmatprep.subr.mxu0 0.0
    %491 = vmatpush1.msra.mxu0 0.0
    %492 = vmatprep.subr.mxu0 0.0
    %493 = vmatpush1.msra.mxu0 0.0
    %494 = vmatprep.subr.mxu0 0.0
    %495 = vmatpush1.msra.mxu0 0.0
    %496 = vmatprep.subr.mxu0 0.0
    %497 = vmatpush1.msra.mxu0 0.0
    %498 = vmatprep.subr.mxu0 0.0
    %499 = vmatpush1.msra.mxu0 0.0
    %500 = vmatprep.subr.mxu0 0.0
    %501 = vmatpush1.msra.mxu0 %v467
    %502 = vmatprep.subr.mxu0 0.0
    %503 = vmatpush1.msra.mxu0 %v466
    %504 = vmatprep.subr.mxu0 0.0
    %505 = vmatpush1.msra.mxu0 %v465
    %506 = vmatprep.subr.mxu0 0.0
    %507 = vmatpush1.msra.mxu0 %v464
    %508 = vmatprep.subr.mxu0 0.0
    %509 = vmatpush2.msra.mxu0 0.0
    %510 = vmatprep.subr.mxu0 0.0
    %511 = vmatpush2.msra.mxu0 0.0
    %512 = vmatprep.subr.mxu0 0.0
    %513 = vmatpush2.msra.mxu0 0.0
    %514 = vmatprep.subr.mxu0 0.0
    %515 = vmatpush2.msra.mxu0 0.0
    %516 = vmatprep.subr.mxu0 0.0
    %517 = vmatpush2.msra.mxu0 0.0
    %518 = vmatprep.subr.mxu0 0.0
    %519 = vmatpush2.msra.mxu0 0.0
    %520 = vmatprep.subr.mxu0 0.0
    %521 = vmatpush2.msra.mxu0 0.0
    %522 = vmatprep.subr.mxu0 0.0
    %523 = vmatpush2.msra.mxu0 0.0
    %524 = vmatprep.subr.mxu0 0.0
    %525 = vmatpush2.msra.mxu0 0.0
    %526 = vmatprep.subr.mxu0 0.0
    %527 = vmatpush2.msra.mxu0 0.0
    %528 = vmatprep.subr.mxu0 0.0
    %529 = vmatpush2.msra.mxu0 0.0
    %530 = vmatprep.subr.mxu0 0.0
    %531 = vmatpush2.msra.mxu0 0.0
    %532 = vmatprep.subr.mxu0 0.0
    %533 = vmatpush2.msra.mxu0 0.0
    %534 = vmatprep.subr.mxu0 0.0
    %535 = vmatpush2.msra.mxu0 0.0
    %536 = vmatprep.subr.mxu0 0.0
    %537 = vmatpush2.msra.mxu0 0.0
    %538 = vmatprep.subr.mxu0 0.0
    %539 = vmatpush2.msra.mxu0 0.0
    %540 = vmatprep.mubr.f32.mxu0 0.0
    %541 = vmatmul.mubr.f32.gmra.mxu0 %v474
    %v542 = vpop.f32.mrf.mxu0
    %v543 = vadd.f32 %v471, %v542
    %v544 = vpop.f32.mrf.mxu0
    %545 = vdwg.mxu0
    %547 = vrot.lane.b32.xlu0 %v543, 120
    %v548 = vpop.permute.xlu0 %547
    %v550 = vmax.f32 %v543, %v548
    %v551 = vsub.f32 %v543, %v550
    %v552 = vmul.f32 %v551, 1.442695
    %v553 = vpow.pop %v552
    %555 = vrot.lane.b32.xlu0 %v550, 8
    %v556 = vpop.permute.xlu0 %555
    %v558 = vsub.f32 %v543, %v556
    %v559 = vmul.f32 %v558, 1.442695
    %v560 = vpow.pop %v559
    %562 = vrot.lane.b32.xlu0 %v560, 120
    %v563 = vpop.permute.xlu0 %562
    %v565 = vadd.f32 %v553, %v563
    %v566 = vrcp.pop %v565
    %v567 = vmul.f32 %v565, %v566
    %v568 = vsub.f32 2.0, %v567
    %v569 = vmul.f32 %v566, %v568
    %v570 = vmul.f32 %v553, %v569
    %v573 = vunpack.c.l.s4 1966171168
    %v574 = vunpack.c.0.s8 %v573
    %v575 = vlaneseq
    %v576 = vshrl.u32 %v575, 7
    %v577 = vsub.s32 %v574, %v576
    %v578 = vrot.slane %v570, %v577
    %v579 = vcombine.high %v578, %v578
    %v581 = vunpack.c.l.s4 1966171168
    %v582 = vunpack.c.0.s8 %v581
    %v583 = vlaneseq
    %v584 = vshrl.u32 %v583, 7
    %v585 = vsub.s32 %v582, %v584
    %v586 = vrot.slane %v578, %v585
    %v588 = vunpack.c.l.s4 1966171168
    %v589 = vunpack.c.0.s8 %v588
    %v590 = vlaneseq
    %v591 = vshrl.u32 %v590, 7
    %v592 = vsub.s32 %v589, %v591
    %v593 = vrot.slane %v579, %v592
    %v594 = vlaneseq
    %v595 = vshrl.u32 %v594, 7
    %v596 = vsub.s32 0, %v595
    %v597 = vrot.slane %v586, %v596
    %v598 = vlaneseq
    %v599 = vshrl.u32 %v598, 7
    %v600 = vsub.s32 0, %v599
    %v601 = vrot.slane %v593, %v600
    %v604 = vmul.f32 %v324, %v597
    %v605 = vmul.f32 %v325, %v597
    %v606 = vmul.f32 %v326, %v601
    %v607 = vmul.f32 %v327, %v601
    %609 = vrot.lane.b32.xlu0 %v569, 8
    %v610 = vpop.permute.xlu0 %609
    %v612 = vmul.f32 %v560, %v610
    %v615 = vunpack.c.l.s4 1966171168
    %v616 = vunpack.c.0.s8 %v615
    %v617 = vlaneseq
    %v618 = vshrl.u32 %v617, 7
    %v619 = vsub.s32 %v616, %v618
    %v620 = vrot.slane %v612, %v619
    %v621 = vcombine.high %v620, %v620
    %v623 = vunpack.c.l.s4 1966171168
    %v624 = vunpack.c.0.s8 %v623
    %v625 = vlaneseq
    %v626 = vshrl.u32 %v625, 7
    %v627 = vsub.s32 %v624, %v626
    %v628 = vrot.slane %v620, %v627
    %v630 = vunpack.c.l.s4 1966171168
    %v631 = vunpack.c.0.s8 %v630
    %v632 = vlaneseq
    %v633 = vshrl.u32 %v632, 7
    %v634 = vsub.s32 %v631, %v633
    %v635 = vrot.slane %v621, %v634
    %v636 = vlaneseq
    %v637 = vshrl.u32 %v636, 7
    %v638 = vsub.s32 0, %v637
    %v639 = vrot.slane %v628, %v638
    %v640 = vlaneseq
    %v641 = vshrl.u32 %v640, 7
    %v642 = vsub.s32 0, %v641
    %v643 = vrot.slane %v635, %v642
    %v646 = vmul.f32 %v324, %v639
    %v647 = vmul.f32 %v325, %v639
    %v648 = vmul.f32 %v326, %v643
    %v649 = vmul.f32 %v327, %v643
    %654 = vrot.lane.b32.xlu0 %v646, 120
    %v655 = vpop.permute.xlu0 %654
    %656 = vrot.lane.b32.xlu0 %v647, 120
    %v657 = vpop.permute.xlu0 %656
    %658 = vrot.lane.b32.xlu0 %v648, 120
    %v659 = vpop.permute.xlu0 %658
    %660 = vrot.lane.b32.xlu0 %v649, 120
    %v661 = vpop.permute.xlu0 %660
    %v666 = vadd.f32 %v604, %v655
    %v667 = vadd.f32 %v605, %v657
    %v668 = vadd.f32 %v606, %v659
    %v669 = vadd.f32 %v607, %v661
    %670 = vxpose.xlu0.b32.start [1/16] %v666, 128
    %671 = vxpose.xlu0.b32.cont [2/16] %v667, 128
    %672 = vxpose.xlu0.b32.cont [3/16] 0.0, 128
    %673 = vxpose.xlu0.b32.cont [4/16] 0.0, 128
    %674 = vxpose.xlu0.b32.cont [5/16] 0.0, 128
    %675 = vxpose.xlu0.b32.cont [6/16] 0.0, 128
    %676 = vxpose.xlu0.b32.cont [7/16] 0.0, 128
    %677 = vxpose.xlu0.b32.cont [8/16] 0.0, 128
    %678 = vxpose.xlu0.b32.cont [9/16] 0.0, 128
    %679 = vxpose.xlu0.b32.cont [10/16] 0.0, 128
    %680 = vxpose.xlu0.b32.cont [11/16] 0.0, 128
    %681 = vxpose.xlu0.b32.cont [12/16] 0.0, 128
    %682 = vxpose.xlu0.b32.cont [13/16] 0.0, 128
    %683 = vxpose.xlu0.b32.cont [14/16] 0.0, 128
    %684 = vxpose.xlu0.b32.cont [15/16] 0.0, 128
    %685 = vxpose.xlu0.b32.end [16/16] 0.0, 128
    %v686 = vpop.trf.xlu0
    %v687 = vpop.trf.xlu0
    %v688 = vpop.trf.xlu0
    %v689 = vpop.trf.xlu0
    %v690 = vpop.trf.xlu0
    %v691 = vpop.trf.xlu0
    %v692 = vpop.trf.xlu0
    %v693 = vpop.trf.xlu0
    %v694 = vpop.trf.xlu0
    %v695 = vpop.trf.xlu0
    %v696 = vpop.trf.xlu0
    %v697 = vpop.trf.xlu0
    %v698 = vpop.trf.xlu0
    %v699 = vpop.trf.xlu0
    %v700 = vpop.trf.xlu0
    %v701 = vpop.trf.xlu0
    %vm702 = vcmask 130048
    %703 = vst.msk [vmem:[#allocation12] sm:$0xff] %vm702, %v686
    %704 = vxpose.xlu0.b32.start [1/16] %v668, 128
    %705 = vxpose.xlu0.b32.cont [2/16] %v669, 128
    %706 = vxpose.xlu0.b32.cont [3/16] 0.0, 128
    %707 = vxpose.xlu0.b32.cont [4/16] 0.0, 128
    %708 = vxpose.xlu0.b32.cont [5/16] 0.0, 128
    %709 = vxpose.xlu0.b32.cont [6/16] 0.0, 128
    %710 = vxpose.xlu0.b32.cont [7/16] 0.0, 128
    %711 = vxpose.xlu0.b32.cont [8/16] 0.0, 128
    %712 = vxpose.xlu0.b32.cont [9/16] 0.0, 128
    %713 = vxpose.xlu0.b32.cont [10/16] 0.0, 128
    %714 = vxpose.xlu0.b32.cont [11/16] 0.0, 128
    %715 = vxpose.xlu0.b32.cont [12/16] 0.0, 128
    %716 = vxpose.xlu0.b32.cont [13/16] 0.0, 128
    %717 = vxpose.xlu0.b32.cont [14/16] 0.0, 128
    %718 = vxpose.xlu0.b32.cont [15/16] 0.0, 128
    %719 = vxpose.xlu0.b32.end [16/16] 0.0, 128
    %v720 = vpop.trf.xlu0
    %v721 = vpop.trf.xlu0
    %v722 = vpop.trf.xlu0
    %v723 = vpop.trf.xlu0
    %v724 = vpop.trf.xlu0
    %v725 = vpop.trf.xlu0
    %v726 = vpop.trf.xlu0
    %v727 = vpop.trf.xlu0
    %v728 = vpop.trf.xlu0
    %v729 = vpop.trf.xlu0
    %v730 = vpop.trf.xlu0
    %v731 = vpop.trf.xlu0
    %v732 = vpop.trf.xlu0
    %v733 = vpop.trf.xlu0
    %v734 = vpop.trf.xlu0
    %v735 = vpop.trf.xlu0
    %s736 = scalar_lea.vmem [#allocation12], 8
    %737 = vst.msk [vmem:[%s736] sm:$0xff] %vm702, %v720
    // Predicated region
    $region42: #{forward.1} parent=1 // pred_check
      _
    $region43: #{forward.1} parent=1 // pred_check_branch
      %739 = sbr.rel (0) target = $region45
    $region44: #{forward.1} parent=1 // pred_region
      %s741 = ssub.s32 256, 256
      %742 = vsyncadd [#allocation5], %s741
      %s743 = sshll.u32 [#allocation12], 4
      %s744 = int_to_ptr.vmem [resolvable:$true] %s743
      %749 = dma.vmem_to_hbm [thread:$0]  %s744, 256, %s5, [#allocation5], 128, 128, 8
    $region45: #{forward.1} parent=1 // pred_fallthru
      _
    // Predicated region
    $region46: #{forward.1} parent=1 // pred_check
      _
    $region47: #{forward.1} parent=1 // pred_check_branch
      %751 = sbr.rel (0) target = $region49
    $region48: #{forward.1} parent=1 // pred_region
      %752 = dma.done [#allocation5], 256
    $region49: #{forward.1} parent=1 // pred_fallthru
      _
    %753 = vsyncpa [#allocation4], 1
    %754 = vsyncpa [#allocation7], 1
    %755 = vsyncpa [#allocation10], 1
    %756 = vsyncpa [#allocation5], 1

</llo_original>
